<compile_context>
chip_gen: v7x
topology: tpu7x:2x2x1
jax: 0.10.0
libtpu: 0.0.40
codegen_flags: <defaults>
</compile_context>

<pallas_src>
import jax
import jax.numpy as jnp
from jax import lax
from jax.experimental import pallas as pl
from jax.experimental.pallas import tpu as pltpu


def _round_up(x, m):
    return ((x + m - 1) // m) * m


# ----------------------------------------------------------------------------
# Fused kernel: block-diag branch MLPs -> joint masked softmax -> fusion MLP
# ----------------------------------------------------------------------------
def _make_fused_kernel(tb, n_pad, h, n_valid):
    """tb: batch rows per grid step; n_pad: common padded sequence length
    (multiple of 8); n_valid: (n_lane, n_cross, n_walk) valid rows per branch."""
    nl, nc, nw = n_valid
    neg_big = -1e30  # softmax mask; exp underflows to exactly 0.0 in f32

    def kernel(x_ref, w1_ref, b1_ref, w2a_ref, b2a_ref,
               fw1_ref, fb1_ref, fw2_ref, fb2_ref, out_ref):
        # ---- branch layer 1 (all three branches in one block-diagonal dot) --
        x = x_ref[...]                                            # (tb*n_pad, 16)
        hid = jnp.maximum(
            jnp.dot(x, w1_ref[...], preferred_element_type=jnp.float32)
            + b1_ref[...], 0.0)                                   # (tb*n_pad, 3h)

        # ---- branch layer 2 + folded attention logits -----------------------
        # columns [0:3h] = e_lane|e_cross|e_walk, [3h:3h+3] = the 3 logits
        ea = (jnp.dot(hid, w2a_ref[...], preferred_element_type=jnp.float32)
              + b2a_ref[...])                                     # (tb*n_pad, 3h+3)
        ea = ea.reshape(tb, n_pad, 3 * h + 3)                     # sublane-aligned
        e_all = ea[:, :, :3 * h]                                  # (tb, n_pad, 3h)
        logits = ea[:, :, 3 * h:]                                 # (tb, n_pad, 3)

        # ---- mask padded sequence rows (per-branch valid length) ------------
        row = lax.broadcasted_iota(jnp.int32, (tb, n_pad, 3), 1)
        col = lax.broadcasted_iota(jnp.int32, (tb, n_pad, 3), 2)
        valid = jnp.where(col == 0, nl, jnp.where(col == 1, nc, nw))
        logits = jnp.where(row < valid, logits, neg_big)

        # ---- softmax over the sequence dim for all 3 branches at once -------
        m = jnp.max(logits, axis=1, keepdims=True)                # (tb, 1, 3)
        p = jnp.exp(logits - m)
        denom = jnp.sum(p, axis=1, keepdims=True)                 # (tb, 1, 3)
        alpha = p / denom                                         # exact divide

        # ---- lane-dense attention-weighted sum -> (tb, 3h) context ----------
        alpha_e = jnp.concatenate(
            [jnp.broadcast_to(alpha[:, :, k:k + 1], (tb, n_pad, h))
             for k in range(3)], axis=-1)                         # (tb, n_pad, 3h)
        ctx = jnp.sum(alpha_e * e_all, axis=1)                    # (tb, 3h)

        # ---- fusion MLP (single (tb,3h)@(3h,h) dot, no scratch round trip) ---
        fused = jnp.maximum(
            jnp.dot(ctx, fw1_ref[...], preferred_element_type=jnp.float32)
            + fb1_ref[...], 0.0)
        out_ref[...] = (jnp.dot(fused, fw2_ref[...],
                                preferred_element_type=jnp.float32)
                        + fb2_ref[...])

    return kernel


# ----------------------------------------------------------------------------
# Wrapper helpers
# ----------------------------------------------------------------------------
def _pack_inputs(lane, cross, walk, n_pad, b_pad):
    """Zero-pad each branch to (b_pad, n_pad, D) and pack features side by side
    into one (b_pad*n_pad, Dl+Dc+Dw) array (single combined kernel input)."""
    def pad(x):
        B, N, _ = x.shape
        return jnp.pad(x, ((0, b_pad - B), (0, n_pad - N), (0, 0)))
    packed = jnp.concatenate([pad(lane), pad(cross), pad(walk)], axis=-1)
    dt = packed.shape[-1]
    return packed.reshape(b_pad * n_pad, dt)


def _build_block_weights(params, H):
    """Block-diagonal branch weights; attention Linear(H,1) folded into W2a."""
    lw1, lb1, lw2, lb2, lwa, lba = params["lane"]
    cw1, cb1, cw2, cb2, cwa, cba = params["crosswalk"]
    ww1, wb1, ww2, wb2, wwa, wba = params["walkway"]
    Dl, Dc, Dw = lw1.shape[0], cw1.shape[0], ww1.shape[0]
    Dt = Dl + Dc + Dw

    W1 = jnp.zeros((Dt, 3 * H), jnp.float32)
    W1 = W1.at[:Dl, :H].set(lw1)
    W1 = W1.at[Dl:Dl + Dc, H:2 * H].set(cw1)
    W1 = W1.at[Dl + Dc:, 2 * H:].set(ww1)
    b1 = jnp.concatenate([lb1, cb1, wb1], axis=1)                 # (1, 3H)

    W2a = jnp.zeros((3 * H, 3 * H + 3), jnp.float32)
    W2a = W2a.at[:H, :H].set(lw2)
    W2a = W2a.at[H:2 * H, H:2 * H].set(cw2)
    W2a = W2a.at[2 * H:, 2 * H:3 * H].set(ww2)
    W2a = W2a.at[:H, 3 * H:3 * H + 1].set(lw2 @ lwa)
    W2a = W2a.at[H:2 * H, 3 * H + 1:3 * H + 2].set(cw2 @ cwa)
    W2a = W2a.at[2 * H:, 3 * H + 2:3 * H + 3].set(ww2 @ wwa)
    b2a = jnp.concatenate(
        [lb2, cb2, wb2,
         lb2 @ lwa + lba, cb2 @ cwa + cba, wb2 @ wwa + wba], axis=1)  # (1, 3H+3)
    return Dt, W1, b1, W2a, b2a


def fused_environment_forward(lane, cross, walk, params):
    B = lane.shape[0]
    H = params["fusion"][0].shape[1]
    Nl, Nc, Nw = lane.shape[1], cross.shape[1], walk.shape[1]
    n_pad = _round_up(max(Nl, Nc, Nw), 8)

    # Batch tiling: one grid step for small/medium batches; for large batches,
    # tiles up to 1024 rows while keeping >= 4 parallel steps (v7x has 2 TCs
    # that only engage with >= 2 parallel steps; v5e/v6e just get fatter steps).
    B8 = _round_up(B, 8)
    if B8 <= 256:
        tb, b_pad = B8, B8
    else:
        tb = min(1024, _round_up(pl.cdiv(B8, 4), 8))
        b_pad = _round_up(B8, tb)
    steps = b_pad // tb
    grid = (steps,)

    x = _pack_inputs(lane, cross, walk, n_pad, b_pad)             # (b_pad*n_pad, Dt)
    Dt, W1, b1, W2a, b2a = _build_block_weights(params, H)
    fw1, fb1, fw2, fb2 = params["fusion"]

    kernel = _make_fused_kernel(tb, n_pad, H, (Nl, Nc, Nw))

    def full(shape):  # weights: whole array, resident across all grid steps
        return pl.BlockSpec(shape, lambda i: (0, 0))

    # Advisory cost estimate for the XLA scheduler.
    flops = b_pad * (2 * n_pad * Dt * 3 * H
                     + 2 * n_pad * 3 * H * (3 * H + 3)
                     + 2 * n_pad * 3 * H
                     + 2 * 3 * H * H + 2 * H * H)
    weight_elems = (W1.size + b1.size + W2a.size + b2a.size
                    + fw1.size + fb1.size + fw2.size + fb2.size)
    cost = pl.CostEstimate(
        flops=int(flops),
        transcendentals=int(b_pad * n_pad * 3),
        bytes_accessed=int((x.size + b_pad * H + weight_elems) * 4))

    # Scoped-VMEM budget sized to the tile (double-buffered input + the two
    # big intermediates), capped well under v7x's 64 MiB physical VMEM.
    in_bytes = tb * n_pad * Dt * 4
    interm_bytes = tb * n_pad * (6 * H + 6) * 4
    vmem_limit = int(min(40 << 20,
                         max(16 << 20, 2 * in_bytes + 2 * interm_bytes + (2 << 20))))

    out = pl.pallas_call(
        kernel,
        grid=grid,
        in_specs=[
            pl.BlockSpec((tb * n_pad, Dt), lambda i: (i, 0)),
            full((Dt, 3 * H)), full((1, 3 * H)),
            full((3 * H, 3 * H + 3)), full((1, 3 * H + 3)),
            full((3 * H, H)), full((1, H)), full((H, H)), full((1, H)),
        ],
        out_specs=pl.BlockSpec((tb, H), lambda i: (i, 0)),
        out_shape=jax.ShapeDtypeStruct((b_pad, H), jnp.float32),
        compiler_params=pltpu.CompilerParams(
            dimension_semantics=("parallel",),
            vmem_limit_bytes=vmem_limit),
        cost_estimate=cost,
    )(x, W1, b1, W2a, b2a, fw1, fb1, fw2, fb2)
    return out[:B]


# ----------------------------------------------------------------------------
# Module-level forward (mirrors EnvironmentEncoder.forward)
# ----------------------------------------------------------------------------
def _canonicalize(feat, batch_size, feat_dim):
    # Mirrors torch: empty -> zeros (B, 1, D); 2-D -> expand to (B, N, D).
    if feat is None or feat.shape[0] == 0:
        return jnp.zeros((batch_size, 1, feat_dim), jnp.float32)
    if feat.ndim == 2:
        feat = jnp.broadcast_to(feat[None], (batch_size,) + feat.shape)
    return feat.astype(jnp.float32)


def environment_encoder(environment_features, ego_position, params):
    lane, cross, walk = environment_features
    B = ego_position.shape[0]
    lane = _canonicalize(lane, B, 7)
    cross = _canonicalize(cross, B, 5)
    walk = _canonicalize(walk, B, 4)
    # ego_position only supplies batch size / device in the torch module.
    return fused_environment_forward(lane, cross, walk, params)


# ----------------------------------------------------------------------------
# Deterministic parameter init (nn.Linear shapes, stored as (in, out))
# ----------------------------------------------------------------------------
def _linear_init(key, din, dout):
    kw, kb = jax.random.split(key)
    bound = 1.0 / jnp.sqrt(jnp.float32(din))
    w = jax.random.uniform(kw, (din, dout), jnp.float32, -bound, bound)
    b = jax.random.uniform(kb, (1, dout), jnp.float32, -bound, bound)
    return w, b


def init_params(key, hidden):
    keys = jax.random.split(key, 10)

    def branch_params(k0, k1, k2, din):
        w1, b1 = _linear_init(k0, din, hidden)
        w2, b2 = _linear_init(k1, hidden, hidden)
        wa, ba = _linear_init(k2, hidden, 1)
        return (w1, b1, w2, b2, wa, ba)

    params = {
        "lane": branch_params(keys[0], keys[1], keys[2], 7),
        "crosswalk": branch_params(keys[3], keys[4], keys[5], 5),
        "walkway": branch_params(keys[6], keys[7], keys[8], 4),
    }
    kf1, kf2 = jax.random.split(keys[9])
    fw1, fb1 = _linear_init(kf1, hidden * 3, hidden)
    fw2, fb2 = _linear_init(kf2, hidden, hidden)
    params["fusion"] = (fw1, fb1, fw2, fb2)
    return params


# ----------------------------------------------------------------------------
# Pure-JAX reference (mirrors the torch forward exactly, no folding/merging)
# ----------------------------------------------------------------------------
def reference_forward(environment_features, ego_position, params):
    lane, cross, walk = environment_features
    B = ego_position.shape[0]
    lane = _canonicalize(lane, B, 7)
    cross = _canonicalize(cross, B, 5)
    walk = _canonicalize(walk, B, 4)

    def branch(x, p):
        w1, b1, w2, b2, wa, ba = p
        h = jnp.maximum(x @ w1 + b1, 0.0)
        e = h @ w2 + b2
        logits = e @ wa + ba                       # (B, N, 1)
        alpha = jax.nn.softmax(logits, axis=1)
        return jnp.sum(alpha * e, axis=1)          # (B, H)

    lc = branch(lane, params["lane"])
    cc = branch(cross, params["crosswalk"])
    wc = branch(walk, params["walkway"])
    comb = jnp.concatenate([lc, cc, wc], axis=1)
    fw1, fb1, fw2, fb2 = params["fusion"]
    h = jnp.maximum(comb @ fw1 + fb1, 0.0)
    return h @ fw2 + fb2


if __name__ == "__main__":
    key = jax.random.PRNGKey(0)
    pkey, dkey = jax.random.split(key)

    HIDDEN = 32
    BATCH = 2
    params = init_params(pkey, HIDDEN)

    k1, k2, k3, k4 = jax.random.split(dkey, 4)
    lane_features = jax.random.normal(k1, (BATCH, 8, 7), jnp.float32)
    crosswalk_features = jax.random.normal(k2, (BATCH, 6, 5), jnp.float32)
    walkway_features = jax.random.normal(k3, (BATCH, 5, 4), jnp.float32)
    ego_position = jax.random.normal(k4, (BATCH, 2), jnp.float32)

    out = environment_encoder(
        (lane_features, crosswalk_features, walkway_features), ego_position, params)
    out = jax.block_until_ready(out)

    ref = reference_forward(
        (lane_features, crosswalk_features, walkway_features), ego_position, params)

    assert out.shape == (BATCH, HIDDEN), out.shape
    # Tolerance 1e-3 covers f32 reassociation from the folded attention logit
    # and block-diagonal matmuls; observed drift is ~1e-6 level.
    assert jnp.allclose(out, ref, atol=1e-3, rtol=1e-3), (
        "Pallas output does not match JAX reference")
    print("KERNEL_OK")
</pallas_src>

<mosaic_0001>
module attributes {stable_mosaic.version = 11 : i64} {
  func.func @kernel(%arg0: i32, %arg1: memref<64x16xf32, #tpu.memory_space<vmem>>, %arg2: memref<16x96xf32, #tpu.memory_space<vmem>>, %arg3: memref<1x96xf32, #tpu.memory_space<vmem>>, %arg4: memref<96x99xf32, #tpu.memory_space<vmem>>, %arg5: memref<1x99xf32, #tpu.memory_space<vmem>>, %arg6: memref<96x32xf32, #tpu.memory_space<vmem>>, %arg7: memref<1x32xf32, #tpu.memory_space<vmem>>, %arg8: memref<32x32xf32, #tpu.memory_space<vmem>>, %arg9: memref<1x32xf32, #tpu.memory_space<vmem>>, %arg10: memref<8x32xf32, #tpu.memory_space<vmem>>) attributes {dimension_semantics = [#tpu.dimension_semantics<parallel>], iteration_bounds = array<i64: 1>, scalar_prefetch = 0 : i64, scratch_operands = 0 : i64, tpu.core_type = #tpu.core_type<tc>, window_params = [{transform_indices = @transform_0, window_bounds = array<i64: 64, 16>}, {pipeline_mode = #tpu.pipeline_mode<synchronous>, transform_indices = @transform_1, window_bounds = array<i64: 16, 96>}, {pipeline_mode = #tpu.pipeline_mode<synchronous>, transform_indices = @transform_2, window_bounds = array<i64: 1, 96>}, {pipeline_mode = #tpu.pipeline_mode<synchronous>, transform_indices = @transform_3, window_bounds = array<i64: 96, 99>}, {pipeline_mode = #tpu.pipeline_mode<synchronous>, transform_indices = @transform_4, window_bounds = array<i64: 1, 99>}, {pipeline_mode = #tpu.pipeline_mode<synchronous>, transform_indices = @transform_5, window_bounds = array<i64: 96, 32>}, {pipeline_mode = #tpu.pipeline_mode<synchronous>, transform_indices = @transform_6, window_bounds = array<i64: 1, 32>}, {pipeline_mode = #tpu.pipeline_mode<synchronous>, transform_indices = @transform_7, window_bounds = array<i64: 32, 32>}, {pipeline_mode = #tpu.pipeline_mode<synchronous>, transform_indices = @transform_8, window_bounds = array<i64: 1, 32>}, {transform_indices = @transform_9, window_bounds = array<i64: 8, 32>}]} {
    %c0 = arith.constant 0 : index
    %c0_0 = arith.constant 0 : index
    %0 = vector.load %arg1[%c0, %c0_0] : memref<64x16xf32, #tpu.memory_space<vmem>>, vector<64x16xf32>
    %c0_1 = arith.constant 0 : index
    %c0_2 = arith.constant 0 : index
    %1 = vector.load %arg2[%c0_1, %c0_2] : memref<16x96xf32, #tpu.memory_space<vmem>>, vector<16x96xf32>
    %cst = arith.constant dense<0.000000e+00> : vector<64x96xf32>
    %2 = tpu.matmul %0, %1, %cst {dimension_numbers = #tpu.dot_dimension_numbers<[1], [0], [0], [1], [0, 0, 1, 1], [], []>} : vector<64x16xf32>, vector<16x96xf32>, vector<64x96xf32> -> vector<64x96xf32>
    %c0_3 = arith.constant 0 : index
    %c0_4 = arith.constant 0 : index
    %3 = vector.load %arg3[%c0_3, %c0_4] : memref<1x96xf32, #tpu.memory_space<vmem>>, vector<1x96xf32>
    %4 = vector.broadcast %3 : vector<1x96xf32> to vector<64x96xf32>
    %5 = arith.addf %2, %4 : vector<64x96xf32>
    %cst_5 = arith.constant 0.000000e+00 : f32
    %6 = vector.broadcast %cst_5 : f32 to vector<64x96xf32>
    %7 = arith.maximumf %5, %6 : vector<64x96xf32>
    %c0_6 = arith.constant 0 : index
    %c0_7 = arith.constant 0 : index
    %8 = vector.load %arg4[%c0_6, %c0_7] : memref<96x99xf32, #tpu.memory_space<vmem>>, vector<96x99xf32>
    %cst_8 = arith.constant dense<0.000000e+00> : vector<64x99xf32>
    %9 = tpu.matmul %7, %8, %cst_8 {dimension_numbers = #tpu.dot_dimension_numbers<[1], [0], [0], [1], [0, 0, 1, 1], [], []>} : vector<64x96xf32>, vector<96x99xf32>, vector<64x99xf32> -> vector<64x99xf32>
    %c0_9 = arith.constant 0 : index
    %c0_10 = arith.constant 0 : index
    %10 = vector.load %arg5[%c0_9, %c0_10] : memref<1x99xf32, #tpu.memory_space<vmem>>, vector<1x99xf32>
    %11 = vector.broadcast %10 : vector<1x99xf32> to vector<64x99xf32>
    %12 = arith.addf %9, %11 : vector<64x99xf32>
    %13 = vector.shape_cast %12 : vector<64x99xf32> to vector<8x8x99xf32>
    %14 = vector.extract_strided_slice %13 {offsets = [0, 0, 0], sizes = [8, 8, 96], strides = [1, 1, 1]} : vector<8x8x99xf32> to vector<8x8x96xf32>
    %15 = vector.extract_strided_slice %13 {offsets = [0, 0, 96], sizes = [8, 8, 3], strides = [1, 1, 1]} : vector<8x8x99xf32> to vector<8x8x3xf32>
    %16 = tpu.iota {dimensions = array<i32: 1>} : vector<8x8x3xi32>
    %17 = tpu.iota {dimensions = array<i32: 2>} : vector<8x8x3xi32>
    %c0_i32 = arith.constant 0 : i32
    %18 = vector.broadcast %c0_i32 : i32 to vector<8x8x3xi32>
    %19 = arith.cmpi eq, %17, %18 : vector<8x8x3xi32>
    %c1_i32 = arith.constant 1 : i32
    %20 = vector.broadcast %c1_i32 : i32 to vector<8x8x3xi32>
    %21 = arith.cmpi eq, %17, %20 : vector<8x8x3xi32>
    %c6_i32 = arith.constant 6 : i32
    %c5_i32 = arith.constant 5 : i32
    %22 = vector.broadcast %c6_i32 : i32 to vector<8x8x3xi32>
    %23 = vector.broadcast %c5_i32 : i32 to vector<8x8x3xi32>
    %24 = arith.select %21, %22, %23 : vector<8x8x3xi1>, vector<8x8x3xi32>
    %c8_i32 = arith.constant 8 : i32
    %25 = vector.broadcast %c8_i32 : i32 to vector<8x8x3xi32>
    %26 = arith.select %19, %25, %24 : vector<8x8x3xi1>, vector<8x8x3xi32>
    %27 = arith.cmpi slt, %16, %26 : vector<8x8x3xi32>
    %cst_11 = arith.constant -1.000000e+30 : f32
    %28 = vector.broadcast %cst_11 : f32 to vector<8x8x3xf32>
    %29 = arith.select %27, %15, %28 : vector<8x8x3xi1>, vector<8x8x3xf32>
    %cst_12 = arith.constant dense<0xFF800000> : vector<8x3xf32>
    %30 = vector.multi_reduction <maximumf>, %29, %cst_12 [1] : vector<8x8x3xf32> to vector<8x3xf32>
    %31 = vector.shape_cast %30 : vector<8x3xf32> to vector<8x1x3xf32>
    %32 = vector.broadcast %31 : vector<8x1x3xf32> to vector<8x8x3xf32>
    %33 = arith.subf %29, %32 : vector<8x8x3xf32>
    %34 = math.exp %33 : vector<8x8x3xf32>
    %cst_13 = arith.constant dense<0.000000e+00> : vector<8x3xf32>
    %35 = vector.multi_reduction <add>, %34, %cst_13 [1] : vector<8x8x3xf32> to vector<8x3xf32>
    %36 = vector.shape_cast %35 : vector<8x3xf32> to vector<8x1x3xf32>
    %37 = vector.broadcast %36 : vector<8x1x3xf32> to vector<8x8x3xf32>
    %38 = arith.divf %34, %37 : vector<8x8x3xf32>
    %39 = vector.extract_strided_slice %38 {offsets = [0, 0, 0], sizes = [8, 8, 1], strides = [1, 1, 1]} : vector<8x8x3xf32> to vector<8x8x1xf32>
    %40 = vector.shape_cast %39 : vector<8x8x1xf32> to vector<8x8x1xf32>
    %41 = vector.broadcast %40 : vector<8x8x1xf32> to vector<8x8x32xf32>
    %42 = vector.extract_strided_slice %38 {offsets = [0, 0, 1], sizes = [8, 8, 1], strides = [1, 1, 1]} : vector<8x8x3xf32> to vector<8x8x1xf32>
    %43 = vector.shape_cast %42 : vector<8x8x1xf32> to vector<8x8x1xf32>
    %44 = vector.broadcast %43 : vector<8x8x1xf32> to vector<8x8x32xf32>
    %45 = vector.extract_strided_slice %38 {offsets = [0, 0, 2], sizes = [8, 8, 1], strides = [1, 1, 1]} : vector<8x8x3xf32> to vector<8x8x1xf32>
    %46 = vector.shape_cast %45 : vector<8x8x1xf32> to vector<8x8x1xf32>
    %47 = vector.broadcast %46 : vector<8x8x1xf32> to vector<8x8x32xf32>
    %48 = tpu.concatenate %41, %44, %47 in 2 : vector<8x8x32xf32>, vector<8x8x32xf32>, vector<8x8x32xf32> -> vector<8x8x96xf32>
    %49 = arith.mulf %48, %14 : vector<8x8x96xf32>
    %cst_14 = arith.constant dense<0.000000e+00> : vector<8x96xf32>
    %50 = vector.multi_reduction <add>, %49, %cst_14 [1] : vector<8x8x96xf32> to vector<8x96xf32>
    %c0_15 = arith.constant 0 : index
    %c0_16 = arith.constant 0 : index
    %51 = vector.load %arg6[%c0_15, %c0_16] : memref<96x32xf32, #tpu.memory_space<vmem>>, vector<96x32xf32>
    %cst_17 = arith.constant dense<0.000000e+00> : vector<8x32xf32>
    %52 = tpu.matmul %50, %51, %cst_17 {dimension_numbers = #tpu.dot_dimension_numbers<[1], [0], [0], [1], [0, 0, 1, 1], [], []>} : vector<8x96xf32>, vector<96x32xf32>, vector<8x32xf32> -> vector<8x32xf32>
    %c0_18 = arith.constant 0 : index
    %c0_19 = arith.constant 0 : index
    %53 = vector.load %arg7[%c0_18, %c0_19] : memref<1x32xf32, #tpu.memory_space<vmem>>, vector<1x32xf32>
    %54 = vector.broadcast %53 : vector<1x32xf32> to vector<8x32xf32>
    %55 = arith.addf %52, %54 : vector<8x32xf32>
    %cst_20 = arith.constant 0.000000e+00 : f32
    %56 = vector.broadcast %cst_20 : f32 to vector<8x32xf32>
    %57 = arith.maximumf %55, %56 : vector<8x32xf32>
    %c0_21 = arith.constant 0 : index
    %c0_22 = arith.constant 0 : index
    %58 = vector.load %arg8[%c0_21, %c0_22] : memref<32x32xf32, #tpu.memory_space<vmem>>, vector<32x32xf32>
    %cst_23 = arith.constant dense<0.000000e+00> : vector<8x32xf32>
    %59 = tpu.matmul %57, %58, %cst_23 {dimension_numbers = #tpu.dot_dimension_numbers<[1], [0], [0], [1], [0, 0, 1, 1], [], []>} : vector<8x32xf32>, vector<32x32xf32>, vector<8x32xf32> -> vector<8x32xf32>
    %c0_24 = arith.constant 0 : index
    %c0_25 = arith.constant 0 : index
    %60 = vector.load %arg9[%c0_24, %c0_25] : memref<1x32xf32, #tpu.memory_space<vmem>>, vector<1x32xf32>
    %61 = vector.broadcast %60 : vector<1x32xf32> to vector<8x32xf32>
    %62 = arith.addf %59, %61 : vector<8x32xf32>
    %c0_26 = arith.constant 0 : index
    %c0_27 = arith.constant 0 : index
    %63 = vector.load %arg10[%c0_26, %c0_27] : memref<8x32xf32, #tpu.memory_space<vmem>>, vector<8x32xf32>
    tpu.vector_store %arg10[%c0_26, %c0_27], %62 {strides = array<i32>} : memref<8x32xf32, #tpu.memory_space<vmem>>, vector<8x32xf32>,
    return
  }
  func.func @transform_0(%arg0: i32) -> (i32, i32) {
    %c0_i32 = arith.constant 0 : i32
    %c0_i32_0 = arith.constant 0 : i32
    return %arg0, %c0_i32 : i32, i32
  }
  func.func @transform_1(%arg0: i32) -> (i32, i32) {
    %c0_i32 = arith.constant 0 : i32
    %c0_i32_0 = arith.constant 0 : i32
    %c0_i32_1 = arith.constant 0 : i32
    return %c0_i32, %c0_i32_0 : i32, i32
  }
  func.func @transform_2(%arg0: i32) -> (i32, i32) {
    %c0_i32 = arith.constant 0 : i32
    %c0_i32_0 = arith.constant 0 : i32
    %c0_i32_1 = arith.constant 0 : i32
    return %c0_i32, %c0_i32_0 : i32, i32
  }
  func.func @transform_3(%arg0: i32) -> (i32, i32) {
    %c0_i32 = arith.constant 0 : i32
    %c0_i32_0 = arith.constant 0 : i32
    %c0_i32_1 = arith.constant 0 : i32
    return %c0_i32, %c0_i32_0 : i32, i32
  }
  func.func @transform_4(%arg0: i32) -> (i32, i32) {
    %c0_i32 = arith.constant 0 : i32
    %c0_i32_0 = arith.constant 0 : i32
    %c0_i32_1 = arith.constant 0 : i32
    return %c0_i32, %c0_i32_0 : i32, i32
  }
  func.func @transform_5(%arg0: i32) -> (i32, i32) {
    %c0_i32 = arith.constant 0 : i32
    %c0_i32_0 = arith.constant 0 : i32
    %c0_i32_1 = arith.constant 0 : i32
    return %c0_i32, %c0_i32_0 : i32, i32
  }
  func.func @transform_6(%arg0: i32) -> (i32, i32) {
    %c0_i32 = arith.constant 0 : i32
    %c0_i32_0 = arith.constant 0 : i32
    %c0_i32_1 = arith.constant 0 : i32
    return %c0_i32, %c0_i32_0 : i32, i32
  }
  func.func @transform_7(%arg0: i32) -> (i32, i32) {
    %c0_i32 = arith.constant 0 : i32
    %c0_i32_0 = arith.constant 0 : i32
    %c0_i32_1 = arith.constant 0 : i32
    return %c0_i32, %c0_i32_0 : i32, i32
  }
  func.func @transform_8(%arg0: i32) -> (i32, i32) {
    %c0_i32 = arith.constant 0 : i32
    %c0_i32_0 = arith.constant 0 : i32
    %c0_i32_1 = arith.constant 0 : i32
    return %c0_i32, %c0_i32_0 : i32, i32
  }
  func.func @transform_9(%arg0: i32) -> (i32, i32) {
    %c0_i32 = arith.constant 0 : i32
    %c0_i32_0 = arith.constant 0 : i32
    return %arg0, %c0_i32 : i32, i32
  }
}

</mosaic_0001>

<llo_original>
// kernel: tpu_custom_call.1
$region0: #{tpu_custom_call.1}
  #allocation0 [shape = 'u32[]', space=smem, size = 0x4, offset = 0x4, fixed_abs, tag = 'smem constant byte address 0x4 - core index']
  #allocation1 [shape = 'u32[144,128]{1,0:T(1,128)}', space=vmem, size = 0x12000, scoped, tag = 'internal scratch']
  %s0 = inlined_call_operand.vmem [shape: f32[64,16], index: 0, kind: input, shape index: {}]
  %s1 = inlined_call_operand.vmem [shape: f32[16,96], index: 1, kind: input, shape index: {}]
  %s2 = inlined_call_operand.vmem [shape: f32[1,96], index: 2, kind: input, shape index: {}]
  %s3 = inlined_call_operand.vmem [shape: f32[96,99], index: 3, kind: input, shape index: {}]
  %s4 = inlined_call_operand.vmem [shape: f32[1,99], index: 4, kind: input, shape index: {}]
  %s5 = inlined_call_operand.vmem [shape: f32[96,32], index: 5, kind: input, shape index: {}]
  %s6 = inlined_call_operand.vmem [shape: f32[1,32], index: 6, kind: input, shape index: {}]
  %s7 = inlined_call_operand.vmem [shape: f32[32,32], index: 7, kind: input, shape index: {}]
  %s8 = inlined_call_operand.vmem [shape: f32[1,32], index: 8, kind: input, shape index: {}]
  %s9 = inlined_call_operand.hbm [shape: f32[8,32], index: 9, kind: output, shape index: {}]
  %s10 = sld [smem:[#allocation0]]
  $region46: #{tpu_custom_call.1} parent=0
    _
  %s12 = ssub.s32 1, %s10
  %s13 = scalar_select 0, %s12, %s10
  $region1: #{tpu_custom_call.1} parent=0
    #allocation2 [shape = 'u8[4096]{0}', space=vmem, size = 0x1000, scoped, tag = 'output window, operand 0, single buffered']
    #allocation3 [shape = 's32[1]{0}', space=sflag, size = 0x4, scoped, tag = 'scoped memory for tpu_custom_call.1']
    %14 = vsyncpa [#allocation3], 0
    // Predicated region
    $region2: #{tpu_custom_call.1} parent=1 // pred_check
      _
    $region3: #{tpu_custom_call.1} parent=1 // pred_check_branch
      %16 = sbr.rel (0) target = $region5
    $region4: #{tpu_custom_call.1} parent=1 // pred_region
      _
    $region5: #{tpu_custom_call.1} parent=1 // pred_fallthru
      _
    // Predicated region
    $region6: #{tpu_custom_call.1} parent=1 // pred_check
      _
    $region7: #{tpu_custom_call.1} parent=1 // pred_check_branch
      %18 = sbr.rel (0) target = $region9
    $region8: #{tpu_custom_call.1} parent=1 // pred_region
      _
    $region9: #{tpu_custom_call.1} parent=1 // pred_fallthru
      _
    // Predicated region
    $region10: #{tpu_custom_call.1} parent=1 // pred_check
      _
    $region11: #{tpu_custom_call.1} parent=1 // pred_check_branch
      %20 = sbr.rel (0) target = $region13
    $region12: #{tpu_custom_call.1} parent=1 // pred_region
      _
    $region13: #{tpu_custom_call.1} parent=1 // pred_fallthru
      _
    // Predicated region
    $region14: #{tpu_custom_call.1} parent=1 // pred_check
      _
    $region15: #{tpu_custom_call.1} parent=1 // pred_check_branch
      %22 = sbr.rel (0) target = $region17
    $region16: #{tpu_custom_call.1} parent=1 // pred_region
      _
    $region17: #{tpu_custom_call.1} parent=1 // pred_fallthru
      _
    // Predicated region
    $region18: #{tpu_custom_call.1} parent=1 // pred_check
      _
    $region19: #{tpu_custom_call.1} parent=1 // pred_check_branch
      %24 = sbr.rel (0) target = $region21
    $region20: #{tpu_custom_call.1} parent=1 // pred_region
      _
    $region21: #{tpu_custom_call.1} parent=1 // pred_fallthru
      _
    // Predicated region
    $region22: #{tpu_custom_call.1} parent=1 // pred_check
      _
    $region23: #{tpu_custom_call.1} parent=1 // pred_check_branch
      %26 = sbr.rel (0) target = $region25
    $region24: #{tpu_custom_call.1} parent=1 // pred_region
      _
    $region25: #{tpu_custom_call.1} parent=1 // pred_fallthru
      _
    // Predicated region
    $region26: #{tpu_custom_call.1} parent=1 // pred_check
      _
    $region27: #{tpu_custom_call.1} parent=1 // pred_check_branch
      %28 = sbr.rel (0) target = $region29
    $region28: #{tpu_custom_call.1} parent=1 // pred_region
      _
    $region29: #{tpu_custom_call.1} parent=1 // pred_fallthru
      _
    // Predicated region
    $region30: #{tpu_custom_call.1} parent=1 // pred_check
      _
    $region31: #{tpu_custom_call.1} parent=1 // pred_check_branch
      %30 = sbr.rel (0) target = $region33
    $region32: #{tpu_custom_call.1} parent=1 // pred_region
      _
    $region33: #{tpu_custom_call.1} parent=1 // pred_fallthru
      _
    // Predicated region
    $region34: #{tpu_custom_call.1} parent=1 // pred_check
      _
    $region35: #{tpu_custom_call.1} parent=1 // pred_check_branch
      %32 = sbr.rel (0) target = $region37
    $region36: #{tpu_custom_call.1} parent=1 // pred_region
      _
    $region37: #{tpu_custom_call.1} parent=1 // pred_fallthru
      _
    %v33 = vld [vmem:[%s0] sm:$0xff]
    %v34 = vld [vmem:[%s0 + $0x8] sm:$0xff]
    %v35 = vld [vmem:[%s0 + $0x10] sm:$0xff]
    %v36 = vld [vmem:[%s0 + $0x18] sm:$0xff]
    %v37 = vld [vmem:[%s0 + $0x20] sm:$0xff]
    %v38 = vld [vmem:[%s0 + $0x28] sm:$0xff]
    %v39 = vld [vmem:[%s0 + $0x30] sm:$0xff]
    %v40 = vld [vmem:[%s0 + $0x38] sm:$0xff]
    %v41 = vld [vmem:[%s1] sm:$0xff]
    %v42 = vld [vmem:[%s1 + $0x8] sm:$0xff]
    %v43 = vld [vmem:[%s2] sm:$0x1]
    %v45 = vlaneseq
    %v46 = vshrl.u32 %v45, 7
    %v47 = vsub.s32 0, %v46
    %v48 = vrot.slane %v43, %v47
    %vm50 = vcmask 130048
    %v52 = vsel %vm50, %v33, 0
    %v55 = vsel %vm50, %v34, 0
    %v58 = vsel %vm50, %v35, 0
    %v61 = vsel %vm50, %v36, 0
    %v64 = vsel %vm50, %v37, 0
    %v67 = vsel %vm50, %v38, 0
    %v70 = vsel %vm50, %v39, 0
    %v73 = vsel %vm50, %v40, 0
    %75 = vmatprep.subr.mxu0 0.0
    %76 = vmatpush1.msra.mxu0 %v41
    %77 = vmatprep.subr.mxu0 0.0
    %78 = vmatpush1.msra.mxu0 %v42
    %79 = vmatprep.subr.mxu0 0.0
    %80 = vmatpush1.msra.mxu0 0.0
    %81 = vmatprep.subr.mxu0 0.0
    %82 = vmatpush1.msra.mxu0 0.0
    %83 = vmatprep.subr.mxu0 0.0
    %84 = vmatpush1.msra.mxu0 0.0
    %85 = vmatprep.subr.mxu0 0.0
    %86 = vmatpush1.msra.mxu0 0.0
    %87 = vmatprep.subr.mxu0 0.0
    %88 = vmatpush1.msra.mxu0 0.0
    %89 = vmatprep.subr.mxu0 0.0
    %90 = vmatpush1.msra.mxu0 0.0
    %91 = vmatprep.subr.mxu0 0.0
    %92 = vmatpush1.msra.mxu0 0.0
    %93 = vmatprep.subr.mxu0 0.0
    %94 = vmatpush1.msra.mxu0 0.0
    %95 = vmatprep.subr.mxu0 0.0
    %96 = vmatpush1.msra.mxu0 0.0
    %97 = vmatprep.subr.mxu0 0.0
    %98 = vmatpush1.msra.mxu0 0.0
    %99 = vmatprep.subr.mxu0 0.0
    %100 = vmatpush1.msra.mxu0 0.0
    %101 = vmatprep.subr.mxu0 0.0
    %102 = vmatpush1.msra.mxu0 0.0
    %103 = vmatprep.subr.mxu0 0.0
    %104 = vmatpush1.msra.mxu0 0.0
    %105 = vmatprep.subr.mxu0 0.0
    %106 = vmatpush1.msra.mxu0 0.0
    %107 = vmatprep.subr.mxu0 0.0
    %108 = vmatpush1.msra.mxu0 0.0
    %109 = vmatprep.subr.mxu0 0.0
    %110 = vmatpush1.msra.mxu0 0.0
    %111 = vmatprep.subr.mxu0 0.0
    %112 = vmatpush1.msra.mxu0 0.0
    %113 = vmatprep.subr.mxu0 0.0
    %114 = vmatpush1.msra.mxu0 0.0
    %115 = vmatprep.subr.mxu0 0.0
    %116 = vmatpush1.msra.mxu0 0.0
    %117 = vmatprep.subr.mxu0 0.0
    %118 = vmatpush1.msra.mxu0 0.0
    %119 = vmatprep.subr.mxu0 0.0
    %120 = vmatpush1.msra.mxu0 0.0
    %121 = vmatprep.subr.mxu0 0.0
    %122 = vmatpush1.msra.mxu0 0.0
    %123 = vmatprep.subr.mxu0 0.0
    %124 = vmatpush1.msra.mxu0 0.0
    %125 = vmatprep.subr.mxu0 0.0
    %126 = vmatpush1.msra.mxu0 0.0
    %127 = vmatprep.subr.mxu0 0.0
    %128 = vmatpush1.msra.mxu0 0.0
    %129 = vmatprep.subr.mxu0 0.0
    %130 = vmatpush1.msra.mxu0 0.0
    %131 = vmatprep.subr.mxu0 0.0
    %132 = vmatpush1.msra.mxu0 0.0
    %133 = vmatprep.subr.mxu0 0.0
    %134 = vmatpush1.msra.mxu0 0.0
    %135 = vmatprep.subr.mxu0 0.0
    %136 = vmatpush1.msra.mxu0 0.0
    %137 = vmatprep.subr.mxu0 0.0
    %138 = vmatpush1.msra.mxu0 0.0
    %139 = vmatprep.mubr.f32.mxu0 0.0
    %140 = vmatmul.mubr.f32.gmra.mrb[0].mxu0 %v52
    %v141 = vpop.f32.mrb[0].mxu0
    %v142 = vadd.f32 %v48, %v141
    %v143 = vpop.f32.mrb[0].mxu0
    %144 = vmatprep.mubr.f32.mxu0 0.0
    %145 = vmatmul.mubr.f32.gmra.mrb[0].mxu0 %v55
    %v146 = vpop.f32.mrb[0].mxu0
    %v147 = vadd.f32 %v48, %v146
    %v148 = vpop.f32.mrb[0].mxu0
    %149 = vmatprep.mubr.f32.mxu0 0.0
    %150 = vmatmul.mubr.f32.gmra.mrb[0].mxu0 %v58
    %v151 = vpop.f32.mrb[0].mxu0
    %v152 = vadd.f32 %v48, %v151
    %v153 = vpop.f32.mrb[0].mxu0
    %154 = vmatprep.mubr.f32.mxu0 0.0
    %155 = vmatmul.mubr.f32.gmra.mrb[0].mxu0 %v61
    %v156 = vpop.f32.mrb[0].mxu0
    %v157 = vadd.f32 %v48, %v156
    %v158 = vpop.f32.mrb[0].mxu0
    %159 = vmatprep.mubr.f32.mxu0 0.0
    %160 = vmatmul.mubr.f32.gmra.mrb[0].mxu0 %v64
    %v161 = vpop.f32.mrb[0].mxu0
    %v162 = vadd.f32 %v48, %v161
    %v163 = vpop.f32.mrb[0].mxu0
    %164 = vmatprep.mubr.f32.mxu0 0.0
    %165 = vmatmul.mubr.f32.gmra.mrb[0].mxu0 %v67
    %v166 = vpop.f32.mrb[0].mxu0
    %v167 = vadd.f32 %v48, %v166
    %v168 = vpop.f32.mrb[0].mxu0
    %169 = vmatprep.mubr.f32.mxu0 0.0
    %170 = vmatmul.mubr.f32.gmra.mrb[0].mxu0 %v70
    %v171 = vpop.f32.mrb[0].mxu0
    %v172 = vadd.f32 %v48, %v171
    %v173 = vpop.f32.mrb[0].mxu0
    %174 = vmatprep.mubr.f32.mxu0 0.0
    %175 = vmatmul.mubr.f32.gmra.mrb[0].mxu0 %v73
    %v176 = vpop.f32.mrb[0].mxu0
    %v177 = vadd.f32 %v48, %v176
    %v178 = vpop.f32.mrb[0].mxu0
    %179 = vdwg.mxu0
    %v180 = vmax.f32 %v142, 0.0
    %v181 = vmax.f32 %v147, 0.0
    %v182 = vmax.f32 %v152, 0.0
    %v183 = vmax.f32 %v157, 0.0
    %v184 = vmax.f32 %v162, 0.0
    %v185 = vmax.f32 %v167, 0.0
    %v186 = vmax.f32 %v172, 0.0
    %v187 = vmax.f32 %v177, 0.0
    %v188 = vld [vmem:[%s3] sm:$0xff]
    %v189 = vld [vmem:[%s3 + $0x8] sm:$0xff]
    %v190 = vld [vmem:[%s3 + $0x10] sm:$0xff]
    %v191 = vld [vmem:[%s3 + $0x18] sm:$0xff]
    %v192 = vld [vmem:[%s3 + $0x20] sm:$0xff]
    %v193 = vld [vmem:[%s3 + $0x28] sm:$0xff]
    %v194 = vld [vmem:[%s3 + $0x30] sm:$0xff]
    %v195 = vld [vmem:[%s3 + $0x38] sm:$0xff]
    %v196 = vld [vmem:[%s3 + $0x40] sm:$0xff]
    %v197 = vld [vmem:[%s3 + $0x48] sm:$0xff]
    %v198 = vld [vmem:[%s3 + $0x50] sm:$0xff]
    %v199 = vld [vmem:[%s3 + $0x58] sm:$0xff]
    %v200 = vld [vmem:[%s4] sm:$0x1]
    %v202 = vlaneseq
    %v203 = vshrl.u32 %v202, 7
    %v204 = vsub.s32 0, %v203
    %v205 = vrot.slane %v200, %v204
    %vm207 = vcmask 785408
    %v209 = vsel %vm207, %v180, 0
    %v212 = vsel %vm207, %v181, 0
    %v215 = vsel %vm207, %v182, 0
    %v218 = vsel %vm207, %v183, 0
    %v221 = vsel %vm207, %v184, 0
    %v224 = vsel %vm207, %v185, 0
    %v227 = vsel %vm207, %v186, 0
    %v230 = vsel %vm207, %v187, 0
    %232 = vmatprep.subr.mxu0 0.0
    %233 = vmatpush1.msra.mxu0 %v188
    %234 = vmatprep.subr.mxu0 0.0
    %235 = vmatpush1.msra.mxu0 %v189
    %236 = vmatprep.subr.mxu0 0.0
    %237 = vmatpush1.msra.mxu0 %v190
    %238 = vmatprep.subr.mxu0 0.0
    %239 = vmatpush1.msra.mxu0 %v191
    %240 = vmatprep.subr.mxu0 0.0
    %241 = vmatpush1.msra.mxu0 %v192
    %242 = vmatprep.subr.mxu0 0.0
    %243 = vmatpush1.msra.mxu0 %v193
    %244 = vmatprep.subr.mxu0 0.0
    %245 = vmatpush1.msra.mxu0 %v194
    %246 = vmatprep.subr.mxu0 0.0
    %247 = vmatpush1.msra.mxu0 %v195
    %248 = vmatprep.subr.mxu0 0.0
    %249 = vmatpush1.msra.mxu0 %v196
    %250 = vmatprep.subr.mxu0 0.0
    %251 = vmatpush1.msra.mxu0 %v197
    %252 = vmatprep.subr.mxu0 0.0
    %253 = vmatpush1.msra.mxu0 %v198
    %254 = vmatprep.subr.mxu0 0.0
    %255 = vmatpush1.msra.mxu0 %v199
    %256 = vmatprep.subr.mxu0 0.0
    %257 = vmatpush1.msra.mxu0 0.0
    %258 = vmatprep.subr.mxu0 0.0
    %259 = vmatpush1.msra.mxu0 0.0
    %260 = vmatprep.subr.mxu0 0.0
    %261 = vmatpush1.msra.mxu0 0.0
    %262 = vmatprep.subr.mxu0 0.0
    %263 = vmatpush1.msra.mxu0 0.0
    %264 = vmatprep.subr.mxu0 0.0
    %265 = vmatpush1.msra.mxu0 0.0
    %266 = vmatprep.subr.mxu0 0.0
    %267 = vmatpush1.msra.mxu0 0.0
    %268 = vmatprep.subr.mxu0 0.0
    %269 = vmatpush1.msra.mxu0 0.0
    %270 = vmatprep.subr.mxu0 0.0
    %271 = vmatpush1.msra.mxu0 0.0
    %272 = vmatprep.subr.mxu0 0.0
    %273 = vmatpush1.msra.mxu0 0.0
    %274 = vmatprep.subr.mxu0 0.0
    %275 = vmatpush1.msra.mxu0 0.0
    %276 = vmatprep.subr.mxu0 0.0
    %277 = vmatpush1.msra.mxu0 0.0
    %278 = vmatprep.subr.mxu0 0.0
    %279 = vmatpush1.msra.mxu0 0.0
    %280 = vmatprep.subr.mxu0 0.0
    %281 = vmatpush1.msra.mxu0 0.0
    %282 = vmatprep.subr.mxu0 0.0
    %283 = vmatpush1.msra.mxu0 0.0
    %284 = vmatprep.subr.mxu0 0.0
    %285 = vmatpush1.msra.mxu0 0.0
    %286 = vmatprep.subr.mxu0 0.0
    %287 = vmatpush1.msra.mxu0 0.0
    %288 = vmatprep.subr.mxu0 0.0
    %289 = vmatpush1.msra.mxu0 0.0
    %290 = vmatprep.subr.mxu0 0.0
    %291 = vmatpush1.msra.mxu0 0.0
    %292 = vmatprep.subr.mxu0 0.0
    %293 = vmatpush1.msra.mxu0 0.0
    %294 = vmatprep.subr.mxu0 0.0
    %295 = vmatpush1.msra.mxu0 0.0
    %296 = vmatprep.mubr.f32.mxu0 0.0
    %297 = vmatmul.mubr.f32.gmra.mrb[0].mxu0 %v209
    %v298 = vpop.f32.mrb[0].mxu0
    %v299 = vadd.f32 %v205, %v298
    %v300 = vpop.f32.mrb[0].mxu0
    %301 = vmatprep.mubr.f32.mxu0 0.0
    %302 = vmatmul.mubr.f32.gmra.mrb[0].mxu0 %v212
    %v303 = vpop.f32.mrb[0].mxu0
    %v304 = vadd.f32 %v205, %v303
    %v305 = vpop.f32.mrb[0].mxu0
    %306 = vmatprep.mubr.f32.mxu0 0.0
    %307 = vmatmul.mubr.f32.gmra.mrb[0].mxu0 %v215
    %v308 = vpop.f32.mrb[0].mxu0
    %v309 = vadd.f32 %v205, %v308
    %v310 = vpop.f32.mrb[0].mxu0
    %311 = vmatprep.mubr.f32.mxu0 0.0
    %312 = vmatmul.mubr.f32.gmra.mrb[0].mxu0 %v218
    %v313 = vpop.f32.mrb[0].mxu0
    %v314 = vadd.f32 %v205, %v313
    %v315 = vpop.f32.mrb[0].mxu0
    %316 = vmatprep.mubr.f32.mxu0 0.0
    %317 = vmatmul.mubr.f32.gmra.mrb[0].mxu0 %v221
    %v318 = vpop.f32.mrb[0].mxu0
    %v319 = vadd.f32 %v205, %v318
    %v320 = vpop.f32.mrb[0].mxu0
    %321 = vmatprep.mubr.f32.mxu0 0.0
    %322 = vmatmul.mubr.f32.gmra.mrb[0].mxu0 %v224
    %v323 = vpop.f32.mrb[0].mxu0
    %v324 = vadd.f32 %v205, %v323
    %v325 = vpop.f32.mrb[0].mxu0
    %326 = vmatprep.mubr.f32.mxu0 0.0
    %327 = vmatmul.mubr.f32.gmra.mrb[0].mxu0 %v227
    %v328 = vpop.f32.mrb[0].mxu0
    %v329 = vadd.f32 %v205, %v328
    %v330 = vpop.f32.mrb[0].mxu0
    %331 = vmatprep.mubr.f32.mxu0 0.0
    %332 = vmatmul.mubr.f32.gmra.mrb[0].mxu0 %v230
    %v333 = vpop.f32.mrb[0].mxu0
    %v334 = vadd.f32 %v205, %v333
    %v335 = vpop.f32.mrb[0].mxu0
    %336 = vdwg.mxu0
    %v337 = vlaneseq
    %v338 = vshrl.u32 %v337, 7
    %v339 = vlaneseq
    %v340 = vand.u32 %v339, 127
    %vm341 = vcmp.eq.s32.totalorder %v340, 0
    %vm342 = vcmp.eq.s32.totalorder %v340, 1
    %v343 = vsel %vm342, 6, 5
    %v344 = vsel %vm341, 8, %v343
    %vm345 = vcmp.lt.s32.totalorder %v338, %v344
    %354 = vrot.lane.b32.xlu0 %v299, 32
    %v355 = vpop.permute.xlu0 %354
    %356 = vrot.lane.b32.xlu0 %v304, 32
    %v357 = vpop.permute.xlu0 %356
    %358 = vrot.lane.b32.xlu0 %v309, 32
    %v359 = vpop.permute.xlu0 %358
    %360 = vrot.lane.b32.xlu0 %v314, 32
    %v361 = vpop.permute.xlu0 %360
    %362 = vrot.lane.b32.xlu0 %v319, 32
    %v363 = vpop.permute.xlu0 %362
    %364 = vrot.lane.b32.xlu0 %v324, 32
    %v365 = vpop.permute.xlu0 %364
    %366 = vrot.lane.b32.xlu0 %v329, 32
    %v367 = vpop.permute.xlu0 %366
    %368 = vrot.lane.b32.xlu0 %v334, 32
    %v369 = vpop.permute.xlu0 %368
    %v378 = vsel %vm345, %v355, -1e+30
    %v379 = vsel %vm345, %v357, -1e+30
    %v380 = vsel %vm345, %v359, -1e+30
    %v381 = vsel %vm345, %v361, -1e+30
    %v382 = vsel %vm345, %v363, -1e+30
    %v383 = vsel %vm345, %v365, -1e+30
    %v384 = vsel %vm345, %v367, -1e+30
    %v385 = vsel %vm345, %v369, -1e+30
    %vm386 = vcmask 23552
    %v387 = vsel %vm386, %v378, -inf
    %v388 = vrot.slane %v387, 4
    %v389 = vmax.f32 %v387, %v388
    %v390 = vrot.slane %v389, 2
    %v391 = vmax.f32 %v389, %v390
    %v392 = vrot.slane %v391, 1
    %v393 = vmax.f32 %v391, %v392
    %v394 = vsel %vm386, %v379, -inf
    %v395 = vrot.slane %v394, 4
    %v396 = vmax.f32 %v394, %v395
    %v397 = vrot.slane %v396, 2
    %v398 = vmax.f32 %v396, %v397
    %v399 = vrot.slane %v398, 1
    %v400 = vmax.f32 %v398, %v399
    %v401 = vsel %vm386, %v380, -inf
    %v402 = vrot.slane %v401, 4
    %v403 = vmax.f32 %v401, %v402
    %v404 = vrot.slane %v403, 2
    %v405 = vmax.f32 %v403, %v404
    %v406 = vrot.slane %v405, 1
    %v407 = vmax.f32 %v405, %v406
    %v408 = vsel %vm386, %v381, -inf
    %v409 = vrot.slane %v408, 4
    %v410 = vmax.f32 %v408, %v409
    %v411 = vrot.slane %v410, 2
    %v412 = vmax.f32 %v410, %v411
    %v413 = vrot.slane %v412, 1
    %v414 = vmax.f32 %v412, %v413
    %v415 = vsel %vm386, %v382, -inf
    %v416 = vrot.slane %v415, 4
    %v417 = vmax.f32 %v415, %v416
    %v418 = vrot.slane %v417, 2
    %v419 = vmax.f32 %v417, %v418
    %v420 = vrot.slane %v419, 1
    %v421 = vmax.f32 %v419, %v420
    %v422 = vsel %vm386, %v383, -inf
    %v423 = vrot.slane %v422, 4
    %v424 = vmax.f32 %v422, %v423
    %v425 = vrot.slane %v424, 2
    %v426 = vmax.f32 %v424, %v425
    %v427 = vrot.slane %v426, 1
    %v428 = vmax.f32 %v426, %v427
    %v429 = vsel %vm386, %v384, -inf
    %v430 = vrot.slane %v429, 4
    %v431 = vmax.f32 %v429, %v430
    %v432 = vrot.slane %v431, 2
    %v433 = vmax.f32 %v431, %v432
    %v434 = vrot.slane %v433, 1
    %v435 = vmax.f32 %v433, %v434
    %v436 = vsel %vm386, %v385, -inf
    %v437 = vrot.slane %v436, 4
    %v438 = vmax.f32 %v436, %v437
    %v439 = vrot.slane %v438, 2
    %v440 = vmax.f32 %v438, %v439
    %v441 = vrot.slane %v440, 1
    %v442 = vmax.f32 %v440, %v441
    %v443 = vsub.f32 %v378, %v393
    %v444 = vsub.f32 %v379, %v400
    %v445 = vsub.f32 %v380, %v407
    %v446 = vsub.f32 %v381, %v414
    %v447 = vsub.f32 %v382, %v421
    %v448 = vsub.f32 %v383, %v428
    %v449 = vsub.f32 %v384, %v435
    %v450 = vsub.f32 %v385, %v442
    %v451 = vmul.f32 %v443, 1.442695
    %v452 = vpow.pop %v451
    %v453 = vmul.f32 %v444, 1.442695
    %v454 = vpow.pop %v453
    %v455 = vmul.f32 %v445, 1.442695
    %v456 = vpow.pop %v455
    %v457 = vmul.f32 %v446, 1.442695
    %v458 = vpow.pop %v457
    %v459 = vmul.f32 %v447, 1.442695
    %v460 = vpow.pop %v459
    %v461 = vmul.f32 %v448, 1.442695
    %v462 = vpow.pop %v461
    %v463 = vmul.f32 %v449, 1.442695
    %v464 = vpow.pop %v463
    %v465 = vmul.f32 %v450, 1.442695
    %v466 = vpow.pop %v465
    %v467 = vsel %vm386, %v452, 0.0
    %v468 = vrot.slane %v467, 4
    %v469 = vadd.f32 %v467, %v468
    %v470 = vrot.slane %v469, 2
    %v471 = vadd.f32 %v469, %v470
    %v472 = vrot.slane %v471, 1
    %v473 = vadd.f32 %v471, %v472
    %v474 = vsel %vm386, %v454, 0.0
    %v475 = vrot.slane %v474, 4
    %v476 = vadd.f32 %v474, %v475
    %v477 = vrot.slane %v476, 2
    %v478 = vadd.f32 %v476, %v477
    %v479 = vrot.slane %v478, 1
    %v480 = vadd.f32 %v478, %v479
    %v481 = vsel %vm386, %v456, 0.0
    %v482 = vrot.slane %v481, 4
    %v483 = vadd.f32 %v481, %v482
    %v484 = vrot.slane %v483, 2
    %v485 = vadd.f32 %v483, %v484
    %v486 = vrot.slane %v485, 1
    %v487 = vadd.f32 %v485, %v486
    %v488 = vsel %vm386, %v458, 0.0
    %v489 = vrot.slane %v488, 4
    %v490 = vadd.f32 %v488, %v489
    %v491 = vrot.slane %v490, 2
    %v492 = vadd.f32 %v490, %v491
    %v493 = vrot.slane %v492, 1
    %v494 = vadd.f32 %v492, %v493
    %v495 = vsel %vm386, %v460, 0.0
    %v496 = vrot.slane %v495, 4
    %v497 = vadd.f32 %v495, %v496
    %v498 = vrot.slane %v497, 2
    %v499 = vadd.f32 %v497, %v498
    %v500 = vrot.slane %v499, 1
    %v501 = vadd.f32 %v499, %v500
    %v502 = vsel %vm386, %v462, 0.0
    %v503 = vrot.slane %v502, 4
    %v504 = vadd.f32 %v502, %v503
    %v505 = vrot.slane %v504, 2
    %v506 = vadd.f32 %v504, %v505
    %v507 = vrot.slane %v506, 1
    %v508 = vadd.f32 %v506, %v507
    %v509 = vsel %vm386, %v464, 0.0
    %v510 = vrot.slane %v509, 4
    %v511 = vadd.f32 %v509, %v510
    %v512 = vrot.slane %v511, 2
    %v513 = vadd.f32 %v511, %v512
    %v514 = vrot.slane %v513, 1
    %v515 = vadd.f32 %v513, %v514
    %v516 = vsel %vm386, %v466, 0.0
    %v517 = vrot.slane %v516, 4
    %v518 = vadd.f32 %v516, %v517
    %v519 = vrot.slane %v518, 2
    %v520 = vadd.f32 %v518, %v519
    %v521 = vrot.slane %v520, 1
    %v522 = vadd.f32 %v520, %v521
    %v523 = vrcp.pop %v473
    %v524 = vmul.f32 %v452, %v523
    %v525 = vrcp.pop %v480
    %v526 = vmul.f32 %v454, %v525
    %v527 = vrcp.pop %v487
    %v528 = vmul.f32 %v456, %v527
    %v529 = vrcp.pop %v494
    %v530 = vmul.f32 %v458, %v529
    %v531 = vrcp.pop %v501
    %v532 = vmul.f32 %v460, %v531
    %v533 = vrcp.pop %v508
    %v534 = vmul.f32 %v462, %v533
    %v535 = vrcp.pop %v515
    %v536 = vmul.f32 %v464, %v535
    %v537 = vrcp.pop %v522
    %v538 = vmul.f32 %v466, %v537
    %540 = vset.pattern.permute.xlu0 0
    %541 = vperm.xlu0 %540, %v524
    %v542 = vpop.permute.xlu0 %541
    %545 = vset.pattern.permute.xlu0 0
    %546 = vperm.xlu0 %545, %v526
    %v547 = vpop.permute.xlu0 %546
    %550 = vset.pattern.permute.xlu0 0
    %551 = vperm.xlu0 %550, %v528
    %v552 = vpop.permute.xlu0 %551
    %555 = vset.pattern.permute.xlu0 0
    %556 = vperm.xlu0 %555, %v530
    %v557 = vpop.permute.xlu0 %556
    %560 = vset.pattern.permute.xlu0 0
    %561 = vperm.xlu0 %560, %v532
    %v562 = vpop.permute.xlu0 %561
    %565 = vset.pattern.permute.xlu0 0
    %566 = vperm.xlu0 %565, %v534
    %v567 = vpop.permute.xlu0 %566
    %570 = vset.pattern.permute.xlu0 0
    %571 = vperm.xlu0 %570, %v536
    %v572 = vpop.permute.xlu0 %571
    %575 = vset.pattern.permute.xlu0 0
    %576 = vperm.xlu0 %575, %v538
    %v577 = vpop.permute.xlu0 %576
    %579 = vset.pattern.permute.xlu0 1
    %580 = vperm.xlu0 %579, %v524
    %v581 = vpop.permute.xlu0 %580
    %583 = vset.pattern.permute.xlu0 1
    %584 = vperm.xlu0 %583, %v526
    %v585 = vpop.permute.xlu0 %584
    %587 = vset.pattern.permute.xlu0 1
    %588 = vperm.xlu0 %587, %v528
    %v589 = vpop.permute.xlu0 %588
    %591 = vset.pattern.permute.xlu0 1
    %592 = vperm.xlu0 %591, %v530
    %v593 = vpop.permute.xlu0 %592
    %595 = vset.pattern.permute.xlu0 1
    %596 = vperm.xlu0 %595, %v532
    %v597 = vpop.permute.xlu0 %596
    %599 = vset.pattern.permute.xlu0 1
    %600 = vperm.xlu0 %599, %v534
    %v601 = vpop.permute.xlu0 %600
    %603 = vset.pattern.permute.xlu0 1
    %604 = vperm.xlu0 %603, %v536
    %v605 = vpop.permute.xlu0 %604
    %607 = vset.pattern.permute.xlu0 1
    %608 = vperm.xlu0 %607, %v538
    %v609 = vpop.permute.xlu0 %608
    %611 = vset.pattern.permute.xlu0 2
    %612 = vperm.xlu0 %611, %v524
    %v613 = vpop.permute.xlu0 %612
    %615 = vset.pattern.permute.xlu0 2
    %616 = vperm.xlu0 %615, %v526
    %v617 = vpop.permute.xlu0 %616
    %619 = vset.pattern.permute.xlu0 2
    %620 = vperm.xlu0 %619, %v528
    %v621 = vpop.permute.xlu0 %620
    %623 = vset.pattern.permute.xlu0 2
    %624 = vperm.xlu0 %623, %v530
    %v625 = vpop.permute.xlu0 %624
    %627 = vset.pattern.permute.xlu0 2
    %628 = vperm.xlu0 %627, %v532
    %v629 = vpop.permute.xlu0 %628
    %631 = vset.pattern.permute.xlu0 2
    %632 = vperm.xlu0 %631, %v534
    %v633 = vpop.permute.xlu0 %632
    %635 = vset.pattern.permute.xlu0 2
    %636 = vperm.xlu0 %635, %v536
    %v637 = vpop.permute.xlu0 %636
    %639 = vset.pattern.permute.xlu0 2
    %640 = vperm.xlu0 %639, %v538
    %v641 = vpop.permute.xlu0 %640
    %vm643 = vcmask 261120
    %v644 = vsel %vm643, %v542, %v581
    %v645 = vsel %vm643, %v547, %v585
    %v646 = vsel %vm643, %v552, %v589
    %v647 = vsel %vm643, %v557, %v593
    %v648 = vsel %vm643, %v562, %v597
    %v649 = vsel %vm643, %v567, %v601
    %v650 = vsel %vm643, %v572, %v605
    %v651 = vsel %vm643, %v577, %v609
    %vm652 = vcmask 523264
    %v653 = vsel %vm652, %v644, %v613
    %v654 = vsel %vm652, %v645, %v617
    %v655 = vsel %vm652, %v646, %v621
    %v656 = vsel %vm652, %v647, %v625
    %v657 = vsel %vm652, %v648, %v629
    %v658 = vsel %vm652, %v649, %v633
    %v659 = vsel %vm652, %v650, %v637
    %v660 = vsel %vm652, %v651, %v641
    %v661 = vmul.f32 %v653, %v299
    %v662 = vmul.f32 %v654, %v304
    %v663 = vmul.f32 %v655, %v309
    %v664 = vmul.f32 %v656, %v314
    %v665 = vmul.f32 %v657, %v319
    %v666 = vmul.f32 %v658, %v324
    %v667 = vmul.f32 %v659, %v329
    %v668 = vmul.f32 %v660, %v334
    %v669 = vsel %vm207, %v661, 0.0
    %v670 = vrot.slane %v669, 4
    %v671 = vadd.f32 %v669, %v670
    %v672 = vrot.slane %v671, 2
    %v673 = vadd.f32 %v671, %v672
    %v674 = vrot.slane %v673, 1
    %v675 = vadd.f32 %v673, %v674
    %v676 = vsel %vm207, %v662, 0.0
    %v677 = vrot.slane %v676, 4
    %v678 = vadd.f32 %v676, %v677
    %v679 = vrot.slane %v678, 2
    %v680 = vadd.f32 %v678, %v679
    %v681 = vrot.slane %v680, 1
    %v682 = vadd.f32 %v680, %v681
    %v683 = vsel %vm207, %v663, 0.0
    %v684 = vrot.slane %v683, 4
    %v685 = vadd.f32 %v683, %v684
    %v686 = vrot.slane %v685, 2
    %v687 = vadd.f32 %v685, %v686
    %v688 = vrot.slane %v687, 1
    %v689 = vadd.f32 %v687, %v688
    %v690 = vsel %vm207, %v664, 0.0
    %v691 = vrot.slane %v690, 4
    %v692 = vadd.f32 %v690, %v691
    %v693 = vrot.slane %v692, 2
    %v694 = vadd.f32 %v692, %v693
    %v695 = vrot.slane %v694, 1
    %v696 = vadd.f32 %v694, %v695
    %v697 = vsel %vm207, %v665, 0.0
    %v698 = vrot.slane %v697, 4
    %v699 = vadd.f32 %v697, %v698
    %v700 = vrot.slane %v699, 2
    %v701 = vadd.f32 %v699, %v700
    %v702 = vrot.slane %v701, 1
    %v703 = vadd.f32 %v701, %v702
    %v704 = vsel %vm207, %v666, 0.0
    %v705 = vrot.slane %v704, 4
    %v706 = vadd.f32 %v704, %v705
    %v707 = vrot.slane %v706, 2
    %v708 = vadd.f32 %v706, %v707
    %v709 = vrot.slane %v708, 1
    %v710 = vadd.f32 %v708, %v709
    %v711 = vsel %vm207, %v667, 0.0
    %v712 = vrot.slane %v711, 4
    %v713 = vadd.f32 %v711, %v712
    %v714 = vrot.slane %v713, 2
    %v715 = vadd.f32 %v713, %v714
    %v716 = vrot.slane %v715, 1
    %v717 = vadd.f32 %v715, %v716
    %v718 = vsel %vm207, %v668, 0.0
    %v719 = vrot.slane %v718, 4
    %v720 = vadd.f32 %v718, %v719
    %v721 = vrot.slane %v720, 2
    %v722 = vadd.f32 %v720, %v721
    %v723 = vrot.slane %v722, 1
    %v724 = vadd.f32 %v722, %v723
    %v725 = vld [vmem:[%s5] sm:$0xff]
    %v726 = vld [vmem:[%s5 + $0x8] sm:$0xff]
    %v727 = vld [vmem:[%s5 + $0x10] sm:$0xff]
    %v728 = vld [vmem:[%s5 + $0x18] sm:$0xff]
    %v729 = vld [vmem:[%s5 + $0x20] sm:$0xff]
    %v730 = vld [vmem:[%s5 + $0x28] sm:$0xff]
    %v731 = vld [vmem:[%s5 + $0x30] sm:$0xff]
    %v732 = vld [vmem:[%s5 + $0x38] sm:$0xff]
    %v733 = vld [vmem:[%s5 + $0x40] sm:$0xff]
    %v734 = vld [vmem:[%s5 + $0x48] sm:$0xff]
    %v735 = vld [vmem:[%s5 + $0x50] sm:$0xff]
    %v736 = vld [vmem:[%s5 + $0x58] sm:$0xff]
    %v737 = vld [vmem:[%s6] sm:$0x1]
    %v739 = vlaneseq
    %v740 = vshrl.u32 %v739, 7
    %v741 = vsub.s32 0, %v740
    %v742 = vrot.slane %v737, %v741
    %vm752 = vcmask 1041409
    %v753 = vsel %vm752, %v682, %v675
    %vm754 = vcmask 1042434
    %v755 = vsel %vm754, %v689, %v753
    %vm756 = vcmask 1043459
    %v757 = vsel %vm756, %v696, %v755
    %vm758 = vcmask 1044484
    %v759 = vsel %vm758, %v703, %v757
    %vm760 = vcmask 1045509
    %v761 = vsel %vm760, %v710, %v759
    %vm762 = vcmask 1046534
    %v763 = vsel %vm762, %v717, %v761
    %vm764 = vcmask 1047559
    %v765 = vsel %vm764, %v724, %v763
    %v766 = vsel %vm207, %v765, 0
    %768 = vmatprep.subr.mxu0 0.0
    %769 = vmatpush1.msra.mxu0 %v725
    %770 = vmatprep.subr.mxu0 0.0
    %771 = vmatpush1.msra.mxu0 %v726
    %772 = vmatprep.subr.mxu0 0.0
    %773 = vmatpush1.msra.mxu0 %v727
    %774 = vmatprep.subr.mxu0 0.0
    %775 = vmatpush1.msra.mxu0 %v728
    %776 = vmatprep.subr.mxu0 0.0
    %777 = vmatpush1.msra.mxu0 %v729
    %778 = vmatprep.subr.mxu0 0.0
    %779 = vmatpush1.msra.mxu0 %v730
    %780 = vmatprep.subr.mxu0 0.0
    %781 = vmatpush1.msra.mxu0 %v731
    %782 = vmatprep.subr.mxu0 0.0
    %783 = vmatpush1.msra.mxu0 %v732
    %784 = vmatprep.subr.mxu0 0.0
    %785 = vmatpush1.msra.mxu0 %v733
    %786 = vmatprep.subr.mxu0 0.0
    %787 = vmatpush1.msra.mxu0 %v734
    %788 = vmatprep.subr.mxu0 0.0
    %789 = vmatpush1.msra.mxu0 %v735
    %790 = vmatprep.subr.mxu0 0.0
    %791 = vmatpush1.msra.mxu0 %v736
    %792 = vmatprep.subr.mxu0 0.0
    %793 = vmatpush1.msra.mxu0 0.0
    %794 = vmatprep.subr.mxu0 0.0
    %795 = vmatpush1.msra.mxu0 0.0
    %796 = vmatprep.subr.mxu0 0.0
    %797 = vmatpush1.msra.mxu0 0.0
    %798 = vmatprep.subr.mxu0 0.0
    %799 = vmatpush1.msra.mxu0 0.0
    %800 = vmatprep.subr.mxu0 0.0
    %801 = vmatpush1.msra.mxu0 0.0
    %802 = vmatprep.subr.mxu0 0.0
    %803 = vmatpush1.msra.mxu0 0.0
    %804 = vmatprep.subr.mxu0 0.0
    %805 = vmatpush1.msra.mxu0 0.0
    %806 = vmatprep.subr.mxu0 0.0
    %807 = vmatpush1.msra.mxu0 0.0
    %808 = vmatprep.subr.mxu0 0.0
    %809 = vmatpush1.msra.mxu0 0.0
    %810 = vmatprep.subr.mxu0 0.0
    %811 = vmatpush1.msra.mxu0 0.0
    %812 = vmatprep.subr.mxu0 0.0
    %813 = vmatpush1.msra.mxu0 0.0
    %814 = vmatprep.subr.mxu0 0.0
    %815 = vmatpush1.msra.mxu0 0.0
    %816 = vmatprep.subr.mxu0 0.0
    %817 = vmatpush1.msra.mxu0 0.0
    %818 = vmatprep.subr.mxu0 0.0
    %819 = vmatpush1.msra.mxu0 0.0
    %820 = vmatprep.subr.mxu0 0.0
    %821 = vmatpush1.msra.mxu0 0.0
    %822 = vmatprep.subr.mxu0 0.0
    %823 = vmatpush1.msra.mxu0 0.0
    %824 = vmatprep.subr.mxu0 0.0
    %825 = vmatpush1.msra.mxu0 0.0
    %826 = vmatprep.subr.mxu0 0.0
    %827 = vmatpush1.msra.mxu0 0.0
    %828 = vmatprep.subr.mxu0 0.0
    %829 = vmatpush1.msra.mxu0 0.0
    %830 = vmatprep.subr.mxu0 0.0
    %831 = vmatpush1.msra.mxu0 0.0
    %832 = vmatprep.mubr.f32.mxu0 0.0
    %833 = vmatmul.mubr.f32.gmra.mrb[0].mxu0 %v766
    %v834 = vpop.f32.mrb[0].mxu0
    %v835 = vadd.f32 %v742, %v834
    %v836 = vpop.f32.mrb[0].mxu0
    %837 = vdwg.mxu0
    %v838 = vmax.f32 %v835, 0.0
    %v839 = vld [vmem:[%s7] sm:$0xff]
    %v840 = vld [vmem:[%s7 + $0x8] sm:$0xff]
    %v841 = vld [vmem:[%s7 + $0x10] sm:$0xff]
    %v842 = vld [vmem:[%s7 + $0x18] sm:$0xff]
    %v843 = vld [vmem:[%s8] sm:$0x1]
    %v845 = vlaneseq
    %v846 = vshrl.u32 %v845, 7
    %v847 = vsub.s32 0, %v846
    %v848 = vrot.slane %v843, %v847
    %v851 = vsel %vm643, %v838, 0
    %853 = vmatprep.subr.mxu0 0.0
    %854 = vmatpush1.msra.mxu0 %v839
    %855 = vmatprep.subr.mxu0 0.0
    %856 = vmatpush1.msra.mxu0 %v840
    %857 = vmatprep.subr.mxu0 0.0
    %858 = vmatpush1.msra.mxu0 %v841
    %859 = vmatprep.subr.mxu0 0.0
    %860 = vmatpush1.msra.mxu0 %v842
    %861 = vmatprep.subr.mxu0 0.0
    %862 = vmatpush1.msra.mxu0 0.0
    %863 = vmatprep.subr.mxu0 0.0
    %864 = vmatpush1.msra.mxu0 0.0
    %865 = vmatprep.subr.mxu0 0.0
    %866 = vmatpush1.msra.mxu0 0.0
    %867 = vmatprep.subr.mxu0 0.0
    %868 = vmatpush1.msra.mxu0 0.0
    %869 = vmatprep.subr.mxu0 0.0
    %870 = vmatpush1.msra.mxu0 0.0
    %871 = vmatprep.subr.mxu0 0.0
    %872 = vmatpush1.msra.mxu0 0.0
    %873 = vmatprep.subr.mxu0 0.0
    %874 = vmatpush1.msra.mxu0 0.0
    %875 = vmatprep.subr.mxu0 0.0
    %876 = vmatpush1.msra.mxu0 0.0
    %877 = vmatprep.subr.mxu0 0.0
    %878 = vmatpush1.msra.mxu0 0.0
    %879 = vmatprep.subr.mxu0 0.0
    %880 = vmatpush1.msra.mxu0 0.0
    %881 = vmatprep.subr.mxu0 0.0
    %882 = vmatpush1.msra.mxu0 0.0
    %883 = vmatprep.subr.mxu0 0.0
    %884 = vmatpush1.msra.mxu0 0.0
    %885 = vmatprep.subr.mxu0 0.0
    %886 = vmatpush1.msra.mxu0 0.0
    %887 = vmatprep.subr.mxu0 0.0
    %888 = vmatpush1.msra.mxu0 0.0
    %889 = vmatprep.subr.mxu0 0.0
    %890 = vmatpush1.msra.mxu0 0.0
    %891 = vmatprep.subr.mxu0 0.0
    %892 = vmatpush1.msra.mxu0 0.0
    %893 = vmatprep.subr.mxu0 0.0
    %894 = vmatpush1.msra.mxu0 0.0
    %895 = vmatprep.subr.mxu0 0.0
    %896 = vmatpush1.msra.mxu0 0.0
    %897 = vmatprep.subr.mxu0 0.0
    %898 = vmatpush1.msra.mxu0 0.0
    %899 = vmatprep.subr.mxu0 0.0
    %900 = vmatpush1.msra.mxu0 0.0
    %901 = vmatprep.subr.mxu0 0.0
    %902 = vmatpush1.msra.mxu0 0.0
    %903 = vmatprep.subr.mxu0 0.0
    %904 = vmatpush1.msra.mxu0 0.0
    %905 = vmatprep.subr.mxu0 0.0
    %906 = vmatpush1.msra.mxu0 0.0
    %907 = vmatprep.subr.mxu0 0.0
    %908 = vmatpush1.msra.mxu0 0.0
    %909 = vmatprep.subr.mxu0 0.0
    %910 = vmatpush1.msra.mxu0 0.0
    %911 = vmatprep.subr.mxu0 0.0
    %912 = vmatpush1.msra.mxu0 0.0
    %913 = vmatprep.subr.mxu0 0.0
    %914 = vmatpush1.msra.mxu0 0.0
    %915 = vmatprep.subr.mxu0 0.0
    %916 = vmatpush1.msra.mxu0 0.0
    %917 = vmatprep.mubr.f32.mxu0 0.0
    %918 = vmatmul.mubr.f32.gmra.mrb[0].mxu0 %v851
    %v919 = vpop.f32.mrb[0].mxu0
    %v920 = vadd.f32 %v848, %v919
    %v921 = vpop.f32.mrb[0].mxu0
    %922 = vdwg.mxu0
    %923 = vst.msk [vmem:[#allocation2] sm:$0xff] %vm643, %v920
    // Predicated region
    $region38: #{tpu_custom_call.1} parent=1 // pred_check
      _
    $region39: #{tpu_custom_call.1} parent=1 // pred_check_branch
      %925 = sbr.rel (0) target = $region41
    $region40: #{tpu_custom_call.1} parent=1 // pred_region
      %s927 = ssub.s32 128, 128
      %928 = vsyncadd [#allocation3], %s927
      %s930 = sshll.u32 [#allocation2], 4
      %s931 = int_to_ptr.vmem [resolvable:$true] %s930
      %933 = dma.vmem_to_hbm [thread:$0]  %s931, 128, %s9, [#allocation3]
    $region41: #{tpu_custom_call.1} parent=1 // pred_fallthru
      _
    // Predicated region
    $region42: #{tpu_custom_call.1} parent=1 // pred_check
      _
    $region43: #{tpu_custom_call.1} parent=1 // pred_check_branch
      %935 = sbr.rel (0) target = $region45
    $region44: #{tpu_custom_call.1} parent=1 // pred_region
      %936 = dma.done [#allocation3], 128
    $region45: #{tpu_custom_call.1} parent=1 // pred_fallthru
      _
    %937 = vsyncpa [#allocation3], 1

</llo_original>
